<compile_context>
chip_gen: v7x
topology: tpu7x:2x2x1
jax: 0.10.0
libtpu: 0.0.40
codegen_flags: <defaults>
</compile_context>

<pallas_src>
import numpy as np

import jax
import jax.numpy as jnp
from jax.experimental import pallas as pl
from jax.experimental.pallas import tpu as pltpu


def _round_up(v, m):
    return ((v + m - 1) // m) * m


# ----------------------------------------------------------------------------
# Fused VNLinear kernel
# ----------------------------------------------------------------------------
def _vn_linear_kernel(x_ref, w_ref, o_ref, slab_ref):
    # x_ref    : [1, 3, C, PT]    component-major input block (f32), PT multiple of 128
    # w_ref    : [Cout, 2C]       Linear weight (bf16); cols 0..C act on x, C..2C on cross
    # o_ref    : [1, 3, Cout, PT] output block (bf16)
    # slab_ref : VMEM [2C, 3*PT]  GEMM RHS slab: x rows on top, cross rows below
    C = x_ref.shape[2]
    PT = x_ref.shape[3]
    inv_c = 1.0 / C

    # Pass 1: per-point channel means (f32) + stage x (bf16) into the top half of the slab.
    # Only the three [1, PT] means stay live afterwards (low vreg pressure).
    means = []
    for i in range(3):
        xi = x_ref[0, i].astype(jnp.float32)                         # [C, PT]
        means.append(jnp.sum(xi, axis=0, keepdims=True) * inv_c)     # [1, PT]
        slab_ref[0:C, i * PT:(i + 1) * PT] = xi.astype(slab_ref.dtype)

    # Pass 2: cross(x, mean)_i = x_{i+1}*m_{i+2} - x_{i+2}*m_{i+1}; stage below the x rows.
    # x is re-read from the VMEM block instead of keeping all components live in f32.
    for i in range(3):
        j, k = (i + 1) % 3, (i + 2) % 3
        xj = x_ref[0, j].astype(jnp.float32)
        xk = x_ref[0, k].astype(jnp.float32)
        cross_i = xj * means[k] - xk * means[j]                       # [C, PT]
        slab_ref[C:2 * C, i * PT:(i + 1) * PT] = cross_i.astype(slab_ref.dtype)

    # One wide, 2C-deep MXU GEMM over all three components at once (f32 accumulation).
    y = jnp.dot(w_ref[...], slab_ref[...],
                preferred_element_type=jnp.float32)                   # [Cout, 3*PT]

    # Lane-dense, unmasked full-lane stores; store each slice as soon as it is produced.
    for i in range(3):
        o_ref[0, i] = y[:, i * PT:(i + 1) * PT].astype(o_ref.dtype)


# ----------------------------------------------------------------------------
# Tile / VMEM-budget selection
# ----------------------------------------------------------------------------
def _pick_tile_and_limit(P, C, Cout, tile_p, in_itemsize, out_itemsize, mm_itemsize,
                         vmem_budget_bytes):
    def est(pt):
        return (2 * 3 * C * pt * in_itemsize          # input block, double-buffered
                + 2 * 3 * Cout * pt * out_itemsize    # output block, double-buffered
                + 2 * Cout * 2 * C * mm_itemsize      # weights, double-buffered
                + 2 * C * 3 * pt * mm_itemsize)       # slab scratch

    P128 = _round_up(max(int(P), 1), 128)
    PT = min(_round_up(int(tile_p), 128), P128)
    while PT > 128 and est(PT) > vmem_budget_bytes:
        PT -= 128
    limit = int(min(max(est(PT) + (8 << 20), 32 << 20), 120 << 20))
    return PT, limit


# ----------------------------------------------------------------------------
# Component-major entry point (no layout passes): x_cm [B, 3, C, P] -> [B, 3, Cout, P]
# ----------------------------------------------------------------------------
def vn_linear_cm(x_cm, weight, *, tile_p=2048, out_dtype=jnp.bfloat16,
                 matmul_dtype=jnp.bfloat16, vmem_budget_bytes=44 * 1024 * 1024):
    B, three, C, P = (int(s) for s in x_cm.shape)
    assert three == 3, "expected the 3-vector axis at dim 1 of the component-major layout"
    Cout = int(weight.shape[0])
    assert int(weight.shape[1]) == 2 * C

    PT, vmem_limit = _pick_tile_and_limit(
        P, C, Cout, tile_p,
        in_itemsize=jnp.dtype(x_cm.dtype).itemsize,
        out_itemsize=jnp.dtype(out_dtype).itemsize,
        mm_itemsize=jnp.dtype(matmul_dtype).itemsize,
        vmem_budget_bytes=vmem_budget_bytes)

    # Pad the point axis UP to a multiple of the chosen PT (never collapse PT to 128).
    Pp = _round_up(P, PT)
    if Pp != P:
        x_cm = jnp.pad(x_cm, ((0, 0), (0, 0), (0, 0), (0, Pp - P)))

    w = weight.astype(matmul_dtype)                    # [Cout, 2C]

    # Put the larger parallel axis first -> balanced sharding across v7x's 2 TensorCores.
    n_p = Pp // PT
    if n_p >= B:
        grid = (n_p, B)
        blk_map = lambda p, b: (b, 0, 0, p)
        w_map = lambda p, b: (0, 0)
    else:
        grid = (B, n_p)
        blk_map = lambda b, p: (b, 0, 0, p)
        w_map = lambda b, p: (0, 0)

    out = pl.pallas_call(
        _vn_linear_kernel,
        out_shape=jax.ShapeDtypeStruct((B, 3, Cout, Pp), out_dtype),
        grid=grid,
        in_specs=[
            pl.BlockSpec((1, 3, C, PT), blk_map),
            pl.BlockSpec((Cout, 2 * C), w_map),
        ],
        out_specs=pl.BlockSpec((1, 3, Cout, PT), blk_map),
        scratch_shapes=[pltpu.VMEM((2 * C, 3 * PT), matmul_dtype)],
        compiler_params=pltpu.CompilerParams(
            dimension_semantics=("parallel", "parallel"),
            vmem_limit_bytes=vmem_limit,
        ),
    )(x_cm, w)

    if Pp != P:
        out = out[..., :P]
    return out


# ----------------------------------------------------------------------------
# PyTorch-layout adapter: x [B, C, 3, *spatial] -> [B, Cout, 3, *spatial]
# (chained VN layers should call vn_linear_cm directly to skip these layout passes)
# ----------------------------------------------------------------------------
def vn_linear(x, weight, *, tile_p=2048, out_dtype=jnp.bfloat16, matmul_dtype=jnp.bfloat16):
    B, C = int(x.shape[0]), int(x.shape[1])
    assert int(x.shape[2]) == 3, "expected the 3-vector axis at dim 2"
    Cout = int(weight.shape[0])
    assert int(weight.shape[1]) == 2 * C

    spatial = tuple(int(s) for s in x.shape[3:])
    P = int(np.prod(spatial)) if spatial else 1

    x_cm = jnp.transpose(jnp.reshape(x, (B, C, 3, P)), (0, 2, 1, 3))    # [B, 3, C, P]
    out_cm = vn_linear_cm(x_cm, weight, tile_p=tile_p, out_dtype=out_dtype,
                          matmul_dtype=matmul_dtype)                    # [B, 3, Cout, P]
    out = jnp.transpose(out_cm, (0, 2, 1, 3))                           # [B, Cout, 3, P]
    return jnp.reshape(out, (B, Cout, 3) + spatial)


# ----------------------------------------------------------------------------
# Pure-JAX reference (for in-script correctness check)
# ----------------------------------------------------------------------------
def vn_linear_reference(x, weight):
    x = x.astype(jnp.float32)
    B, C = x.shape[0], x.shape[1]
    Cout = weight.shape[0]
    spatial = x.shape[3:]
    x_mean = jnp.broadcast_to(jnp.mean(x, axis=1, keepdims=True), x.shape)
    a = jnp.moveaxis(x, 2, -1)
    b = jnp.moveaxis(x_mean, 2, -1)
    x_cross = jnp.moveaxis(jnp.cross(a, b), -1, 2)
    x_cat = jnp.concatenate([x, x_cross], axis=1)              # [B, 2C, 3, ...]
    x_cat_flat = jnp.reshape(x_cat, (B, 2 * C, -1))
    out = jnp.einsum('oc,bcp->bop', weight, x_cat_flat)
    return jnp.reshape(out, (B, Cout, 3) + spatial)


# ----------------------------------------------------------------------------
if __name__ == "__main__":
    key = jax.random.PRNGKey(0)
    B, C, N, K = 2, 4, 32, 8          # x: [B, in_channels, 3, N_samples, k]
    Cout = 16

    kx, kw = jax.random.split(key, 2)
    x = jax.random.normal(kx, (B, C, 3, N, K), jnp.float32)
    bound = 1.0 / np.sqrt(2 * C)       # nn.Linear-style init for Linear(2C -> Cout)
    weight = jax.random.uniform(kw, (Cout, 2 * C), jnp.float32, -bound, bound)

    fwd = jax.jit(vn_linear)
    out = fwd(x, weight)
    jax.block_until_ready(out)

    assert out.shape == (B, Cout, 3, N, K), out.shape
    assert bool(jnp.all(jnp.isfinite(out.astype(jnp.float32))))

    ref = vn_linear_reference(x, weight)
    max_err = float(jnp.max(jnp.abs(out.astype(jnp.float32) - ref)))
    assert max_err < 5e-2, f"max abs error {max_err}"
    print("KERNEL_OK")
</pallas_src>

<mosaic_0001>
module attributes {stable_mosaic.version = 11 : i64} {
  func.func @_vn_linear_kernel(%arg0: i32, %arg1: i32, %arg2: memref<1x3x4x256xf32, #tpu.memory_space<vmem>>, %arg3: memref<16x8xbf16, #tpu.memory_space<vmem>>, %arg4: memref<1x3x16x256xbf16, #tpu.memory_space<vmem>>, %arg5: memref<8x768xbf16, #tpu.memory_space<vmem>>) attributes {dimension_semantics = [#tpu.dimension_semantics<parallel>, #tpu.dimension_semantics<parallel>], iteration_bounds = array<i64: 2, 1>, scalar_prefetch = 0 : i64, scratch_operands = 1 : i64, tpu.core_type = #tpu.core_type<tc>, window_params = [{transform_indices = @transform_0, window_bounds = array<i64: 1, 3, 4, 256>}, {pipeline_mode = #tpu.pipeline_mode<synchronous>, transform_indices = @transform_1, window_bounds = array<i64: 16, 8>}, {transform_indices = @transform_2, window_bounds = array<i64: 1, 3, 16, 256>}]} {
    %c0 = arith.constant 0 : index
    %c0_0 = arith.constant 0 : index
    %c0_1 = arith.constant 0 : index
    %c0_2 = arith.constant 0 : index
    %0 = vector.load %arg2[%c0, %c0_0, %c0_1, %c0_2] : memref<1x3x4x256xf32, #tpu.memory_space<vmem>>, vector<1x1x4x256xf32>
    %1 = vector.shape_cast %0 : vector<1x1x4x256xf32> to vector<4x256xf32>
    %cst = arith.constant dense<0.000000e+00> : vector<256xf32>
    %2 = vector.multi_reduction <add>, %1, %cst [0] : vector<4x256xf32> to vector<256xf32>
    %3 = vector.shape_cast %2 : vector<256xf32> to vector<1x256xf32>
    %cst_3 = arith.constant 2.500000e-01 : f32
    %4 = vector.broadcast %cst_3 : f32 to vector<1x256xf32>
    %5 = arith.mulf %3, %4 : vector<1x256xf32>
    %6 = arith.truncf %1 : vector<4x256xf32> to vector<4x256xbf16>
    %c0_4 = arith.constant 0 : index
    %c0_5 = arith.constant 0 : index
    %7 = vector.load %arg5[%c0_4, %c0_5] : memref<8x768xbf16, #tpu.memory_space<vmem>>, vector<4x256xbf16>
    tpu.vector_store %arg5[%c0_4, %c0_5], %6 {strides = array<i32>} : memref<8x768xbf16, #tpu.memory_space<vmem>>, vector<4x256xbf16>,
    %c0_6 = arith.constant 0 : index
    %c1 = arith.constant 1 : index
    %c0_7 = arith.constant 0 : index
    %c0_8 = arith.constant 0 : index
    %8 = vector.load %arg2[%c0_6, %c1, %c0_7, %c0_8] : memref<1x3x4x256xf32, #tpu.memory_space<vmem>>, vector<1x1x4x256xf32>
    %9 = vector.shape_cast %8 : vector<1x1x4x256xf32> to vector<4x256xf32>
    %cst_9 = arith.constant dense<0.000000e+00> : vector<256xf32>
    %10 = vector.multi_reduction <add>, %9, %cst_9 [0] : vector<4x256xf32> to vector<256xf32>
    %11 = vector.shape_cast %10 : vector<256xf32> to vector<1x256xf32>
    %cst_10 = arith.constant 2.500000e-01 : f32
    %12 = vector.broadcast %cst_10 : f32 to vector<1x256xf32>
    %13 = arith.mulf %11, %12 : vector<1x256xf32>
    %14 = arith.truncf %9 : vector<4x256xf32> to vector<4x256xbf16>
    %c0_11 = arith.constant 0 : index
    %c256 = arith.constant 256 : index
    %15 = vector.load %arg5[%c0_11, %c256] : memref<8x768xbf16, #tpu.memory_space<vmem>>, vector<4x256xbf16>
    tpu.vector_store %arg5[%c0_11, %c256], %14 {strides = array<i32>} : memref<8x768xbf16, #tpu.memory_space<vmem>>, vector<4x256xbf16>,
    %c0_12 = arith.constant 0 : index
    %c2 = arith.constant 2 : index
    %c0_13 = arith.constant 0 : index
    %c0_14 = arith.constant 0 : index
    %16 = vector.load %arg2[%c0_12, %c2, %c0_13, %c0_14] : memref<1x3x4x256xf32, #tpu.memory_space<vmem>>, vector<1x1x4x256xf32>
    %17 = vector.shape_cast %16 : vector<1x1x4x256xf32> to vector<4x256xf32>
    %cst_15 = arith.constant dense<0.000000e+00> : vector<256xf32>
    %18 = vector.multi_reduction <add>, %17, %cst_15 [0] : vector<4x256xf32> to vector<256xf32>
    %19 = vector.shape_cast %18 : vector<256xf32> to vector<1x256xf32>
    %cst_16 = arith.constant 2.500000e-01 : f32
    %20 = vector.broadcast %cst_16 : f32 to vector<1x256xf32>
    %21 = arith.mulf %19, %20 : vector<1x256xf32>
    %22 = arith.truncf %17 : vector<4x256xf32> to vector<4x256xbf16>
    %c0_17 = arith.constant 0 : index
    %c512 = arith.constant 512 : index
    %23 = vector.load %arg5[%c0_17, %c512] : memref<8x768xbf16, #tpu.memory_space<vmem>>, vector<4x256xbf16>
    tpu.vector_store %arg5[%c0_17, %c512], %22 {strides = array<i32>} : memref<8x768xbf16, #tpu.memory_space<vmem>>, vector<4x256xbf16>,
    %c0_18 = arith.constant 0 : index
    %c1_19 = arith.constant 1 : index
    %c0_20 = arith.constant 0 : index
    %c0_21 = arith.constant 0 : index
    %24 = vector.load %arg2[%c0_18, %c1_19, %c0_20, %c0_21] : memref<1x3x4x256xf32, #tpu.memory_space<vmem>>, vector<1x1x4x256xf32>
    %25 = vector.shape_cast %24 : vector<1x1x4x256xf32> to vector<4x256xf32>
    %c0_22 = arith.constant 0 : index
    %c2_23 = arith.constant 2 : index
    %c0_24 = arith.constant 0 : index
    %c0_25 = arith.constant 0 : index
    %26 = vector.load %arg2[%c0_22, %c2_23, %c0_24, %c0_25] : memref<1x3x4x256xf32, #tpu.memory_space<vmem>>, vector<1x1x4x256xf32>
    %27 = vector.shape_cast %26 : vector<1x1x4x256xf32> to vector<4x256xf32>
    %28 = vector.broadcast %21 : vector<1x256xf32> to vector<4x256xf32>
    %29 = arith.mulf %25, %28 : vector<4x256xf32>
    %30 = vector.broadcast %13 : vector<1x256xf32> to vector<4x256xf32>
    %31 = arith.mulf %27, %30 : vector<4x256xf32>
    %32 = arith.subf %29, %31 : vector<4x256xf32>
    %33 = arith.truncf %32 : vector<4x256xf32> to vector<4x256xbf16>
    %c4 = arith.constant 4 : index
    %c0_26 = arith.constant 0 : index
    %34 = vector.load %arg5[%c4, %c0_26] : memref<8x768xbf16, #tpu.memory_space<vmem>>, vector<4x256xbf16>
    tpu.vector_store %arg5[%c4, %c0_26], %33 {strides = array<i32>} : memref<8x768xbf16, #tpu.memory_space<vmem>>, vector<4x256xbf16>,
    %c0_27 = arith.constant 0 : index
    %c2_28 = arith.constant 2 : index
    %c0_29 = arith.constant 0 : index
    %c0_30 = arith.constant 0 : index
    %35 = vector.load %arg2[%c0_27, %c2_28, %c0_29, %c0_30] : memref<1x3x4x256xf32, #tpu.memory_space<vmem>>, vector<1x1x4x256xf32>
    %36 = vector.shape_cast %35 : vector<1x1x4x256xf32> to vector<4x256xf32>
    %c0_31 = arith.constant 0 : index
    %c0_32 = arith.constant 0 : index
    %c0_33 = arith.constant 0 : index
    %c0_34 = arith.constant 0 : index
    %37 = vector.load %arg2[%c0_31, %c0_32, %c0_33, %c0_34] : memref<1x3x4x256xf32, #tpu.memory_space<vmem>>, vector<1x1x4x256xf32>
    %38 = vector.shape_cast %37 : vector<1x1x4x256xf32> to vector<4x256xf32>
    %39 = vector.broadcast %5 : vector<1x256xf32> to vector<4x256xf32>
    %40 = arith.mulf %36, %39 : vector<4x256xf32>
    %41 = vector.broadcast %21 : vector<1x256xf32> to vector<4x256xf32>
    %42 = arith.mulf %38, %41 : vector<4x256xf32>
    %43 = arith.subf %40, %42 : vector<4x256xf32>
    %44 = arith.truncf %43 : vector<4x256xf32> to vector<4x256xbf16>
    %c4_35 = arith.constant 4 : index
    %c256_36 = arith.constant 256 : index
    %45 = vector.load %arg5[%c4_35, %c256_36] : memref<8x768xbf16, #tpu.memory_space<vmem>>, vector<4x256xbf16>
    tpu.vector_store %arg5[%c4_35, %c256_36], %44 {strides = array<i32>} : memref<8x768xbf16, #tpu.memory_space<vmem>>, vector<4x256xbf16>,
    %c0_37 = arith.constant 0 : index
    %c0_38 = arith.constant 0 : index
    %c0_39 = arith.constant 0 : index
    %c0_40 = arith.constant 0 : index
    %46 = vector.load %arg2[%c0_37, %c0_38, %c0_39, %c0_40] : memref<1x3x4x256xf32, #tpu.memory_space<vmem>>, vector<1x1x4x256xf32>
    %47 = vector.shape_cast %46 : vector<1x1x4x256xf32> to vector<4x256xf32>
    %c0_41 = arith.constant 0 : index
    %c1_42 = arith.constant 1 : index
    %c0_43 = arith.constant 0 : index
    %c0_44 = arith.constant 0 : index
    %48 = vector.load %arg2[%c0_41, %c1_42, %c0_43, %c0_44] : memref<1x3x4x256xf32, #tpu.memory_space<vmem>>, vector<1x1x4x256xf32>
    %49 = vector.shape_cast %48 : vector<1x1x4x256xf32> to vector<4x256xf32>
    %50 = vector.broadcast %13 : vector<1x256xf32> to vector<4x256xf32>
    %51 = arith.mulf %47, %50 : vector<4x256xf32>
    %52 = vector.broadcast %5 : vector<1x256xf32> to vector<4x256xf32>
    %53 = arith.mulf %49, %52 : vector<4x256xf32>
    %54 = arith.subf %51, %53 : vector<4x256xf32>
    %55 = arith.truncf %54 : vector<4x256xf32> to vector<4x256xbf16>
    %c4_45 = arith.constant 4 : index
    %c512_46 = arith.constant 512 : index
    %56 = vector.load %arg5[%c4_45, %c512_46] : memref<8x768xbf16, #tpu.memory_space<vmem>>, vector<4x256xbf16>
    tpu.vector_store %arg5[%c4_45, %c512_46], %55 {strides = array<i32>} : memref<8x768xbf16, #tpu.memory_space<vmem>>, vector<4x256xbf16>,
    %c0_47 = arith.constant 0 : index
    %c0_48 = arith.constant 0 : index
    %57 = vector.load %arg3[%c0_47, %c0_48] : memref<16x8xbf16, #tpu.memory_space<vmem>>, vector<16x8xbf16>
    %c0_49 = arith.constant 0 : index
    %c0_50 = arith.constant 0 : index
    %58 = vector.load %arg5[%c0_49, %c0_50] : memref<8x768xbf16, #tpu.memory_space<vmem>>, vector<8x768xbf16>
    %cst_51 = arith.constant dense<0.000000e+00> : vector<16x768xf32>
    %59 = tpu.matmul %57, %58, %cst_51 {dimension_numbers = #tpu.dot_dimension_numbers<[1], [0], [0], [1], [0, 0, 1, 1], [], []>} : vector<16x8xbf16>, vector<8x768xbf16>, vector<16x768xf32> -> vector<16x768xf32>
    %60 = vector.extract_strided_slice %59 {offsets = [0, 0], sizes = [16, 256], strides = [1, 1]} : vector<16x768xf32> to vector<16x256xf32>
    %61 = arith.truncf %60 : vector<16x256xf32> to vector<16x256xbf16>
    %c0_52 = arith.constant 0 : index
    %c0_53 = arith.constant 0 : index
    %c0_54 = arith.constant 0 : index
    %c0_55 = arith.constant 0 : index
    %62 = vector.load %arg4[%c0_52, %c0_53, %c0_54, %c0_55] : memref<1x3x16x256xbf16, #tpu.memory_space<vmem>>, vector<1x1x16x256xbf16>
    %63 = vector.shape_cast %62 : vector<1x1x16x256xbf16> to vector<16x256xbf16>
    %64 = vector.shape_cast %61 : vector<16x256xbf16> to vector<1x1x16x256xbf16>
    tpu.vector_store %arg4[%c0_52, %c0_53, %c0_54, %c0_55], %64 {strides = array<i32>} : memref<1x3x16x256xbf16, #tpu.memory_space<vmem>>, vector<1x1x16x256xbf16>,
    %65 = vector.extract_strided_slice %59 {offsets = [0, 256], sizes = [16, 256], strides = [1, 1]} : vector<16x768xf32> to vector<16x256xf32>
    %66 = arith.truncf %65 : vector<16x256xf32> to vector<16x256xbf16>
    %c0_56 = arith.constant 0 : index
    %c1_57 = arith.constant 1 : index
    %c0_58 = arith.constant 0 : index
    %c0_59 = arith.constant 0 : index
    %67 = vector.load %arg4[%c0_56, %c1_57, %c0_58, %c0_59] : memref<1x3x16x256xbf16, #tpu.memory_space<vmem>>, vector<1x1x16x256xbf16>
    %68 = vector.shape_cast %67 : vector<1x1x16x256xbf16> to vector<16x256xbf16>
    %69 = vector.shape_cast %66 : vector<16x256xbf16> to vector<1x1x16x256xbf16>
    tpu.vector_store %arg4[%c0_56, %c1_57, %c0_58, %c0_59], %69 {strides = array<i32>} : memref<1x3x16x256xbf16, #tpu.memory_space<vmem>>, vector<1x1x16x256xbf16>,
    %70 = vector.extract_strided_slice %59 {offsets = [0, 512], sizes = [16, 256], strides = [1, 1]} : vector<16x768xf32> to vector<16x256xf32>
    %71 = arith.truncf %70 : vector<16x256xf32> to vector<16x256xbf16>
    %c0_60 = arith.constant 0 : index
    %c2_61 = arith.constant 2 : index
    %c0_62 = arith.constant 0 : index
    %c0_63 = arith.constant 0 : index
    %72 = vector.load %arg4[%c0_60, %c2_61, %c0_62, %c0_63] : memref<1x3x16x256xbf16, #tpu.memory_space<vmem>>, vector<1x1x16x256xbf16>
    %73 = vector.shape_cast %72 : vector<1x1x16x256xbf16> to vector<16x256xbf16>
    %74 = vector.shape_cast %71 : vector<16x256xbf16> to vector<1x1x16x256xbf16>
    tpu.vector_store %arg4[%c0_60, %c2_61, %c0_62, %c0_63], %74 {strides = array<i32>} : memref<1x3x16x256xbf16, #tpu.memory_space<vmem>>, vector<1x1x16x256xbf16>,
    return
  }
  func.func @transform_0(%arg0: i32, %arg1: i32) -> (i32, i32, i32, i32) {
    %c0_i32 = arith.constant 0 : i32
    %c0_i32_0 = arith.constant 0 : i32
    %c0_i32_1 = arith.constant 0 : i32
    return %arg0, %c0_i32, %c0_i32_0, %arg1 : i32, i32, i32, i32
  }
  func.func @transform_1(%arg0: i32, %arg1: i32) -> (i32, i32) {
    %c0_i32 = arith.constant 0 : i32
    %c0_i32_0 = arith.constant 0 : i32
    %c0_i32_1 = arith.constant 0 : i32
    return %c0_i32, %c0_i32_0 : i32, i32
  }
  func.func @transform_2(%arg0: i32, %arg1: i32) -> (i32, i32, i32, i32) {
    %c0_i32 = arith.constant 0 : i32
    %c0_i32_0 = arith.constant 0 : i32
    %c0_i32_1 = arith.constant 0 : i32
    return %arg0, %c0_i32, %c0_i32_0, %arg1 : i32, i32, i32, i32
  }
}

</mosaic_0001>

<llo_original>
// kernel: vn_linear.1
$region0: #{vn_linear.1}
  #allocation0 [shape = 'u32[]', space=smem, size = 0x4, offset = 0x4, fixed_abs, tag = 'smem constant byte address 0x4 - core index']
  #allocation1 [shape = 'u32[144,128]{1,0:T(1,128)}', space=vmem, size = 0x12000, scoped, tag = 'internal scratch']
  #allocation2 [shape = 'bf16[8,768]{1,0:T(8,128)(2,1)}', space=vmem, size = 0x3000, scoped, tag = 'scratch operand']
  %s0 = inlined_call_operand.vmem [shape: f32[2,3,4,256], index: 0, kind: input, shape index: {}]
  %s1 = inlined_call_operand.vmem [shape: bf16[16,8], index: 1, kind: input, shape index: {}]
  %s2 = inlined_call_operand.vmem [shape: bf16[2,3,16,256], index: 2, kind: output, shape index: {}]
  %s3 = sld [smem:[#allocation0]]
  $region41: #{vn_linear.1} parent=0
    _
  %s5 = ssub.s32 1, %s3
  %s6 = scalar_select 0, %s5, %s3
  loop: start=0, step=1, limit=4
  $region2: #{vn_linear.1} parent=0 // loop_pre_header
    _
  $region3: #{vn_linear.1} parent=0 // loop_header
    %s8 = sphi 0, %s12
    %p9 = scmp.ge.s32.totalorder %s8, 4
    %s15 = sphi 0, %s27
    %s16 = sphi 0, %s23
    %s17 = sphi 0, %s15
    %s18 = sphi 0, %s16
    %s19 = sphi 0, %s17
    %s20 = sphi 0, %s18
    %s32 = sphi 0, %s34
    %s35 = sphi 0, %s32
    %s36 = sphi 0, %s35
    %s52 = sphi 0, %s36
    %s56 = sphi 0, %s56
    %s58 = sphi 0, %s56
    %s59 = sphi 0, %s58
    %s73 = sphi 0, %s59
    %s81 = sphi 0, %s83
    %s84 = sphi 0, %s81
    %s85 = sphi 0, %s84
    %s101 = sphi 0, %s85
  $region4: #{vn_linear.1} parent=0 // loop_header_branch
    %11 = sbr.rel (%p9) target = $region8
  $region5: #{vn_linear.1} parent=0 // loop_body
    %s13 = ssub.s32 %s8, 1
    %s14 = ssub.s32 %s8, 2
    %s21 = sadd.s32 1, %s16
    %p22 = scmp.ge.s32.totalorder %s21, 1
    %s23 = scalar_select %p22, 0, %s21
    %s24 = sadd.s32 1, %s15
    %s25 = scalar_select %p22, %s24, %s15
    %p26 = scmp.ge.s32.totalorder %s25, 2
    %s27 = scalar_select %p26, 0, %s25
    %s28 = ssub.s32 %s15, %s27
    %s29 = ssub.s32 %s16, %s23
    %s30 = sor.u32 %s28, %s29
    %p31 = scmp.eq.s32.totalorder %s30, 0
    %s33 = sadd.s32 %s32, 1
    %s34 = scalar_select %p31, %s32, %s33
    %p37 = pneg %p31
    %p38 = scmp.eq.s32.totalorder %s8, 1
    %p39 = por %p37, %p38
    %p40 = scmp.ne.s32.totalorder %s32, %s35
    %p41 = scmp.eq.s32.totalorder %s8, 0
    %p42 = por %p40, %p41
    %p43 = scmp.ne.s32.totalorder %s32, %s35
    %p44 = scmp.eq.s32.totalorder %s13, 1
    %p45 = por %p43, %p44
    %p46 = scmp.ne.s32.totalorder %s35, %s36
    %p47 = scmp.eq.s32.totalorder %s13, 0
    %p48 = por %p46, %p47
    %p49 = scmp.ne.s32.totalorder %s35, %s36
    %p50 = scmp.eq.s32.totalorder %s14, 1
    %p51 = por %p49, %p50
    %p53 = scmp.ne.s32.totalorder %s36, %s52
    %p54 = scmp.eq.s32.totalorder %s14, 0
    %p55 = por %p53, %p54
    %s57 = sadd.s32 %s56, 1
    %p60 = scmp.eq.s32.totalorder %s8, 1
    %p61 = scmp.ne.s32.totalorder %s56, %s58
    %p62 = scmp.eq.s32.totalorder %s8, 0
    %p63 = por %p61, %p62
    %p64 = scmp.ne.s32.totalorder %s56, %s58
    %p65 = scmp.eq.s32.totalorder %s13, 1
    %p66 = por %p64, %p65
    %p67 = scmp.ne.s32.totalorder %s58, %s59
    %p68 = scmp.eq.s32.totalorder %s13, 0
    %p69 = por %p67, %p68
    %p70 = scmp.ne.s32.totalorder %s58, %s59
    %p71 = scmp.eq.s32.totalorder %s14, 1
    %p72 = por %p70, %p71
    %p74 = scmp.ne.s32.totalorder %s59, %s73
    %p75 = scmp.eq.s32.totalorder %s14, 0
    %p76 = por %p74, %p75
    %s77 = ssub.s32 %s15, %s27
    %s78 = ssub.s32 %s16, %s23
    %s79 = sor.u32 %s77, %s78
    %p80 = scmp.eq.s32.totalorder %s79, 0
    %s82 = sadd.s32 %s81, 1
    %s83 = scalar_select %p80, %s81, %s82
    %p86 = pneg %p80
    %p87 = scmp.eq.s32.totalorder %s8, 1
    %p88 = por %p86, %p87
    %p89 = scmp.ne.s32.totalorder %s81, %s84
    %p90 = scmp.eq.s32.totalorder %s8, 0
    %p91 = por %p89, %p90
    %p92 = scmp.ne.s32.totalorder %s81, %s84
    %p93 = scmp.eq.s32.totalorder %s13, 1
    %p94 = por %p92, %p93
    %p95 = scmp.ne.s32.totalorder %s84, %s85
    %p96 = scmp.eq.s32.totalorder %s13, 0
    %p97 = por %p95, %p96
    %p98 = scmp.ne.s32.totalorder %s84, %s85
    %p99 = scmp.eq.s32.totalorder %s14, 1
    %p100 = por %p98, %p99
    %p102 = scmp.ne.s32.totalorder %s85, %s101
    %p103 = scmp.eq.s32.totalorder %s14, 0
    %p104 = por %p102, %p103
    %p105 = scmp.le.s32.totalorder 1, %s8
    %p106 = scmp.lt.s32.totalorder %s8, 3
    %p107 = pnand %p105, %p106
    %p108 = pneg %p107
    // Predicated region
    $region9: #{vn_linear.1} parent=5 // pred_check
      _
    $region10: #{vn_linear.1} parent=5 // pred_check_branch
      %110 = sbr.rel (%p107) target = $region12
    $region11: #{vn_linear.1} parent=5 // pred_region
      %s111 = ssub.s32 %s8, 1
      // Predicated region
      $region13: #{vn_linear.1} parent=11 // pred_check
        %p112 = pneg %p69
      $region14: #{vn_linear.1} parent=11 // pred_check_branch
        %114 = sbr.rel (%p112) target = $region16
      $region15: #{vn_linear.1} parent=11 // pred_region
        _
      $region16: #{vn_linear.1} parent=11 // pred_fallthru
        _
    $region12: #{vn_linear.1} parent=5 // pred_fallthru
      _
    %p115 = scmp.lt.s32.totalorder %s8, 2
    // Predicated region
    $region17: #{vn_linear.1} parent=5 // pred_check
      %p116 = pneg %p115
    $region18: #{vn_linear.1} parent=5 // pred_check_branch
      %118 = sbr.rel (%p116) target = $region20
    $region19: #{vn_linear.1} parent=5 // pred_region
      // Predicated region
      $region21: #{vn_linear.1} parent=19 // pred_check
        %p119 = pneg %p42
      $region22: #{vn_linear.1} parent=19 // pred_check_branch
        %121 = sbr.rel (%p119) target = $region24
      $region23: #{vn_linear.1} parent=19 // pred_region
        %s122 = smul.u32 2, %s16
        %p123 = scmp.lt.s32.totalorder %s15, 1
        %s124 = scalar_select %p123, %s15, 1
        %p125 = scmp.lt.s32.totalorder %s122, 1
        %s126 = scalar_select %p125, %s122, 1
        %s127 = smul.addr %s124, 6
        %s128 = sadd.s32 %s126, %s127
        %s129 = smul.addr %s128, 4
        %s130 = scalar_lea.vmem %s0, %s129
        %s131 = smul.u32 2, %s16
      $region24: #{vn_linear.1} parent=19 // pred_fallthru
        _
    $region20: #{vn_linear.1} parent=5 // pred_fallthru
      _
    %p132 = scmp.le.s32.totalorder 1, %s8
    %p133 = scmp.lt.s32.totalorder %s8, 3
    %p134 = pnand %p132, %p133
    %p135 = pneg %p134
    // Predicated region
    $region25: #{vn_linear.1} parent=5 // pred_check
      _
    $region26: #{vn_linear.1} parent=5 // pred_check_branch
      %137 = sbr.rel (%p134) target = $region28
    $region27: #{vn_linear.1} parent=5 // pred_region
      %s138 = ssub.s32 %s8, 1
      %s139 = smul.u32 2, %s18
      %p140 = scmp.lt.s32.totalorder %s17, 1
      %s141 = scalar_select %p140, %s17, 1
      %p142 = scmp.lt.s32.totalorder %s139, 1
      %s143 = scalar_select %p142, %s139, 1
      %s144 = smul.addr %s141, 6
      %s145 = sadd.s32 %s143, %s144
      %s146 = smul.addr %s145, 4
      %s147 = scalar_lea.vmem %s0, %s146
      %p148 = pneg %p48
      %p149 = pneg %p45
      %p150 = pneg %p69
      %p151 = pneg %p66
      %p152 = pneg %p97
      %p153 = pneg %p94
      %s154 = smul.u32 2, %s18
      %p155 = scmp.lt.s32.totalorder %s17, 1
      %s156 = scalar_select %p155, %s17, 1
      %p157 = scmp.lt.s32.totalorder %s154, 1
      %s158 = scalar_select %p157, %s154, 1
      %s159 = smul.addr %s156, 12
      %s160 = sadd.s32 %s158, %s159
      %s161 = smul.addr %s160, 4
      %s162 = scalar_lea.vmem %s2, %s161
      %s163 = smul.u32 2, %s18
      %p164 = scmp.lt.s32.totalorder %s17, 1
      %s165 = scalar_select %p164, %s17, 1
      %p166 = scmp.lt.s32.totalorder %s163, 1
      %s167 = scalar_select %p166, %s163, 1
      %s168 = smul.addr %s165, 6
      %s169 = sadd.s32 %s167, %s168
      %s170 = smul.addr %s169, 4
      %s171 = scalar_lea.vmem %s0, %s170
      %s172 = smul.u32 2, %s18
      %s173 = smul.u32 2, %s18
      %p174 = scmp.lt.s32.totalorder %s17, 1
      %s175 = scalar_select %p174, %s17, 1
      %p176 = scmp.lt.s32.totalorder %s173, 1
      %s177 = scalar_select %p176, %s173, 1
      %s178 = smul.addr %s175, 12
      %s179 = sadd.s32 %s177, %s178
      %s180 = smul.addr %s179, 4
      %s181 = scalar_lea.vmem %s2, %s180
      %s182 = smul.u32 2, %s18
      %v184 = vld [vmem:[%s171] sm:$0xff]
      %v186 = vcombine.high %v184, %v184
      %vm188 = vcmask 1043456
      %v189 = vsel %vm188, %v184, 0.0
      %v190 = vrot.slane %v189, 4
      %v191 = vadd.f32 %v189, %v190
      %v192 = vrot.slane %v191, 2
      %v193 = vadd.f32 %v191, %v192
      %v194 = vrot.slane %v193, 1
      %v195 = vadd.f32 %v193, %v194
      %v196 = vsel %vm188, %v186, 0.0
      %v197 = vrot.slane %v196, 4
      %v198 = vadd.f32 %v196, %v197
      %v199 = vrot.slane %v198, 2
      %v200 = vadd.f32 %v198, %v199
      %v201 = vrot.slane %v200, 1
      %v202 = vadd.f32 %v200, %v201
      %v203 = vmul.f32 %v195, 0.25
      %v204 = vmul.f32 %v202, 0.25
      %v205 = vpack.c.bf16 %v184, %v184
      %v206 = vpack.c.bf16 %v186, %v186
      %v209 = vunpack.c.l.b16 %v205
      %v210 = vunpack.c.l.b16 %v206
      %v211 = vpack.c.b16 %v210, %v209
      %213 = vst [vmem:[#allocation2] sm:$0x33] %v211
      %s214 = scalar_lea.vmem %s171, 8
      %v215 = vld [vmem:[%s214] sm:$0xff]
      %v217 = vcombine.high %v215, %v215
      %v219 = vsel %vm188, %v215, 0.0
      %v220 = vrot.slane %v219, 4
      %v221 = vadd.f32 %v219, %v220
      %v222 = vrot.slane %v221, 2
      %v223 = vadd.f32 %v221, %v222
      %v224 = vrot.slane %v223, 1
      %v225 = vadd.f32 %v223, %v224
      %v226 = vsel %vm188, %v217, 0.0
      %v227 = vrot.slane %v226, 4
      %v228 = vadd.f32 %v226, %v227
      %v229 = vrot.slane %v228, 2
      %v230 = vadd.f32 %v228, %v229
      %v231 = vrot.slane %v230, 1
      %v232 = vadd.f32 %v230, %v231
      %v233 = vmul.f32 %v225, 0.25
      %v234 = vmul.f32 %v232, 0.25
      %v235 = vpack.c.bf16 %v215, %v215
      %v236 = vpack.c.bf16 %v217, %v217
      %v239 = vunpack.c.l.b16 %v235
      %v240 = vunpack.c.l.b16 %v236
      %v241 = vpack.c.b16 %v240, %v239
      %243 = vst [vmem:[#allocation2 + $0x8] sm:$0x33] %v241
      %s244 = scalar_lea.vmem %s171, 16
      %v245 = vld [vmem:[%s244] sm:$0xff]
      %v247 = vcombine.high %v245, %v245
      %v249 = vsel %vm188, %v245, 0.0
      %v250 = vrot.slane %v249, 4
      %v251 = vadd.f32 %v249, %v250
      %v252 = vrot.slane %v251, 2
      %v253 = vadd.f32 %v251, %v252
      %v254 = vrot.slane %v253, 1
      %v255 = vadd.f32 %v253, %v254
      %v256 = vsel %vm188, %v247, 0.0
      %v257 = vrot.slane %v256, 4
      %v258 = vadd.f32 %v256, %v257
      %v259 = vrot.slane %v258, 2
      %v260 = vadd.f32 %v258, %v259
      %v261 = vrot.slane %v260, 1
      %v262 = vadd.f32 %v260, %v261
      %v263 = vmul.f32 %v255, 0.25
      %v264 = vmul.f32 %v262, 0.25
      %v265 = vpack.c.bf16 %v245, %v245
      %v266 = vpack.c.bf16 %v247, %v247
      %v269 = vunpack.c.l.b16 %v265
      %v270 = vunpack.c.l.b16 %v266
      %v271 = vpack.c.b16 %v270, %v269
      %273 = vst [vmem:[#allocation2 + $0x10] sm:$0x33] %v271
      %v274 = vld [vmem:[%s214] sm:$0xff]
      %v275 = vld [vmem:[%s244] sm:$0xff]
      %v278 = vcombine.low %v263, %v264
      %v280 = vmul.f32 %v274, %v278
      %v283 = vcombine.low %v233, %v234
      %v285 = vmul.f32 %v275, %v283
      %v286 = vsub.f32 %v280, %v285
      %v288 = vcombine.high %v286, %v286
      %v290 = vpack.c.bf16 %v286, %v286
      %v291 = vpack.c.bf16 %v288, %v288
      %v294 = vunpack.c.l.b16 %v290
      %v295 = vunpack.c.l.b16 %v291
      %v296 = vpack.c.b16 %v295, %v294
      %v297 = vrot.slane %v296, 6
      %299 = vst [vmem:[#allocation2] sm:$0xcc] %v297
      %v300 = vld [vmem:[%s244] sm:$0xff]
      %v301 = vld [vmem:[%s171] sm:$0xff]
      %v304 = vcombine.low %v203, %v204
      %v306 = vmul.f32 %v300, %v304
      %v307 = vmul.f32 %v301, %v278
      %v308 = vsub.f32 %v306, %v307
      %v310 = vcombine.high %v308, %v308
      %v312 = vpack.c.bf16 %v308, %v308
      %v313 = vpack.c.bf16 %v310, %v310
      %v316 = vunpack.c.l.b16 %v312
      %v317 = vunpack.c.l.b16 %v313
      %v318 = vpack.c.b16 %v317, %v316
      %v319 = vrot.slane %v318, 6
      %321 = vst [vmem:[#allocation2 + $0x8] sm:$0xcc] %v319
      %v322 = vld [vmem:[%s171] sm:$0xff]
      %v323 = vld [vmem:[%s214] sm:$0xff]
      %v324 = vmul.f32 %v322, %v283
      %v325 = vmul.f32 %v323, %v304
      %v326 = vsub.f32 %v324, %v325
      %v328 = vcombine.high %v326, %v326
      %v330 = vpack.c.bf16 %v326, %v326
      %v331 = vpack.c.bf16 %v328, %v328
      %v334 = vunpack.c.l.b16 %v330
      %v335 = vunpack.c.l.b16 %v331
      %v336 = vpack.c.b16 %v335, %v334
      %v337 = vrot.slane %v336, 6
      %339 = vst [vmem:[#allocation2 + $0x10] sm:$0xcc] %v337
      %v340 = vld [vmem:[%s1] sm:$0xf]
      %v341 = vld [vmem:[%s1 + $0x4] sm:$0xf]
      %v342 = vld [vmem:[#allocation2] sm:$0xff]
      %v343 = vld [vmem:[#allocation2 + $0x8] sm:$0xff]
      %v344 = vld [vmem:[#allocation2 + $0x10] sm:$0xff]
      %v347 = vunpack.c.l.b16 %v340
      %v348 = vunpack.c.l.b16 %v341
      %v349 = vpack.c.b16 %v348, %v347
      %v353 = vunpack.c.l.b16 %v342
      %v354 = vunpack.c.h.b16 %v342
      %v355 = vunpack.c.l.b16 %v343
      %v356 = vunpack.c.h.b16 %v343
      %v357 = vunpack.c.l.b16 %v344
      %v358 = vunpack.c.h.b16 %v344
      %v359 = vpack.c.b16 %v353, %v353
      %v360 = vpack.c.b16 %v354, %v354
      %v361 = vpack.c.b16 %v355, %v355
      %v362 = vpack.c.b16 %v356, %v356
      %v363 = vpack.c.b16 %v357, %v357
      %v364 = vpack.c.b16 %v358, %v358
      %vm365 = vcmask 64512
      %v367 = vsel %vm365, %v349, 0
      %v370 = vsel %vm188, %v359, 0
      %v373 = vsel %vm188, %v360, 0
      %v376 = vsel %vm188, %v361, 0
      %v379 = vsel %vm188, %v362, 0
      %v382 = vsel %vm188, %v363, 0
      %v385 = vsel %vm188, %v364, 0
      %387 = vmatprep.subr.bf16.mxu0 %v373
      %388 = vmatpush1.bf16.msra.mxu0 %v370
      %389 = vmatprep.subr.bf16.mxu0 0
      %390 = vmatpush1.bf16.msra.mxu0 0
      %391 = vmatprep.subr.bf16.mxu0 0
      %392 = vmatpush1.bf16.msra.mxu0 0
      %393 = vmatprep.subr.bf16.mxu0 0
      %394 = vmatpush1.bf16.msra.mxu0 0
      %395 = vmatprep.subr.bf16.mxu0 0
      %396 = vmatpush1.bf16.msra.mxu0 0
      %397 = vmatprep.subr.bf16.mxu0 0
      %398 = vmatpush1.bf16.msra.mxu0 0
      %399 = vmatprep.subr.bf16.mxu0 0
      %400 = vmatpush1.bf16.msra.mxu0 0
      %401 = vmatprep.subr.bf16.mxu0 0
      %402 = vmatpush1.bf16.msra.mxu0 0
      %403 = vmatprep.subr.bf16.mxu0 0
      %404 = vmatpush1.bf16.msra.mxu0 0
      %405 = vmatprep.subr.bf16.mxu0 0
      %406 = vmatpush1.bf16.msra.mxu0 0
      %407 = vmatprep.subr.bf16.mxu0 0
      %408 = vmatpush1.bf16.msra.mxu0 0
      %409 = vmatprep.subr.bf16.mxu0 0
      %410 = vmatpush1.bf16.msra.mxu0 0
      %411 = vmatprep.subr.bf16.mxu0 0
      %412 = vmatpush1.bf16.msra.mxu0 0
      %413 = vmatprep.subr.bf16.mxu0 0
      %414 = vmatpush1.bf16.msra.mxu0 0
      %415 = vmatprep.subr.bf16.mxu0 0
      %416 = vmatpush1.bf16.msra.mxu0 0
      %417 = vmatprep.subr.bf16.mxu0 0
      %418 = vmatpush1.bf16.msra.mxu0 0
      %419 = vmatprep.mubr.bf16.mxu0 0
      %420 = vmatmul.mubr.bf16.gmra.mrb[0].mxu0 %v367
      %v421 = vpop.f32.mrb[0].mxu0
      %v422 = vadd.f32 0.0, %v421
      %v423 = vpop.f32.mrb[0].mxu0
      %v424 = vadd.f32 0.0, %v423
      %v425 = vpop.f32.mrb[0].mxu0
      %v426 = vadd.f32 0.0, %v425
      %v427 = vpop.f32.mrb[0].mxu0
      %v428 = vadd.f32 0.0, %v427
      %429 = vdwg.mxu0
      %430 = vmatprep.subr.bf16.mxu0 %v379
      %431 = vmatpush1.bf16.msra.mxu0 %v376
      %432 = vmatprep.subr.bf16.mxu0 0
      %433 = vmatpush1.bf16.msra.mxu0 0
      %434 = vmatprep.subr.bf16.mxu0 0
      %435 = vmatpush1.bf16.msra.mxu0 0
      %436 = vmatprep.subr.bf16.mxu0 0
      %437 = vmatpush1.bf16.msra.mxu0 0
      %438 = vmatprep.subr.bf16.mxu0 0
      %439 = vmatpush1.bf16.msra.mxu0 0
      %440 = vmatprep.subr.bf16.mxu0 0
      %441 = vmatpush1.bf16.msra.mxu0 0
      %442 = vmatprep.subr.bf16.mxu0 0
      %443 = vmatpush1.bf16.msra.mxu0 0
      %444 = vmatprep.subr.bf16.mxu0 0
      %445 = vmatpush1.bf16.msra.mxu0 0
      %446 = vmatprep.subr.bf16.mxu0 0
      %447 = vmatpush1.bf16.msra.mxu0 0
      %448 = vmatprep.subr.bf16.mxu0 0
      %449 = vmatpush1.bf16.msra.mxu0 0
      %450 = vmatprep.subr.bf16.mxu0 0
      %451 = vmatpush1.bf16.msra.mxu0 0
      %452 = vmatprep.subr.bf16.mxu0 0
      %453 = vmatpush1.bf16.msra.mxu0 0
      %454 = vmatprep.subr.bf16.mxu0 0
      %455 = vmatpush1.bf16.msra.mxu0 0
      %456 = vmatprep.subr.bf16.mxu0 0
      %457 = vmatpush1.bf16.msra.mxu0 0
      %458 = vmatprep.subr.bf16.mxu0 0
      %459 = vmatpush1.bf16.msra.mxu0 0
      %460 = vmatprep.subr.bf16.mxu0 0
      %461 = vmatpush1.bf16.msra.mxu0 0
      %462 = vmatprep.mubr.bf16.mxu0 0
      %463 = vmatmul.mubr.bf16.gmra.mrb[0].mxu0 %v367
      %v464 = vpop.f32.mrb[0].mxu0
      %v465 = vadd.f32 0.0, %v464
      %v466 = vpop.f32.mrb[0].mxu0
      %v467 = vadd.f32 0.0, %v466
      %v468 = vpop.f32.mrb[0].mxu0
      %v469 = vadd.f32 0.0, %v468
      %v470 = vpop.f32.mrb[0].mxu0
      %v471 = vadd.f32 0.0, %v470
      %472 = vdwg.mxu0
      %473 = vmatprep.subr.bf16.mxu0 %v385
      %474 = vmatpush1.bf16.msra.mxu0 %v382
      %475 = vmatprep.subr.bf16.mxu0 0
      %476 = vmatpush1.bf16.msra.mxu0 0
      %477 = vmatprep.subr.bf16.mxu0 0
      %478 = vmatpush1.bf16.msra.mxu0 0
      %479 = vmatprep.subr.bf16.mxu0 0
      %480 = vmatpush1.bf16.msra.mxu0 0
      %481 = vmatprep.subr.bf16.mxu0 0
      %482 = vmatpush1.bf16.msra.mxu0 0
      %483 = vmatprep.subr.bf16.mxu0 0
      %484 = vmatpush1.bf16.msra.mxu0 0
      %485 = vmatprep.subr.bf16.mxu0 0
      %486 = vmatpush1.bf16.msra.mxu0 0
      %487 = vmatprep.subr.bf16.mxu0 0
      %488 = vmatpush1.bf16.msra.mxu0 0
      %489 = vmatprep.subr.bf16.mxu0 0
      %490 = vmatpush1.bf16.msra.mxu0 0
      %491 = vmatprep.subr.bf16.mxu0 0
      %492 = vmatpush1.bf16.msra.mxu0 0
      %493 = vmatprep.subr.bf16.mxu0 0
      %494 = vmatpush1.bf16.msra.mxu0 0
      %495 = vmatprep.subr.bf16.mxu0 0
      %496 = vmatpush1.bf16.msra.mxu0 0
      %497 = vmatprep.subr.bf16.mxu0 0
      %498 = vmatpush1.bf16.msra.mxu0 0
      %499 = vmatprep.subr.bf16.mxu0 0
      %500 = vmatpush1.bf16.msra.mxu0 0
      %501 = vmatprep.subr.bf16.mxu0 0
      %502 = vmatpush1.bf16.msra.mxu0 0
      %503 = vmatprep.subr.bf16.mxu0 0
      %504 = vmatpush1.bf16.msra.mxu0 0
      %505 = vmatprep.mubr.bf16.mxu0 0
      %506 = vmatmul.mubr.bf16.gmra.mrb[0].mxu0 %v367
      %v507 = vpop.f32.mrb[0].mxu0
      %v508 = vadd.f32 0.0, %v507
      %v509 = vpop.f32.mrb[0].mxu0
      %v510 = vadd.f32 0.0, %v509
      %v511 = vpop.f32.mrb[0].mxu0
      %v512 = vadd.f32 0.0, %v511
      %v513 = vpop.f32.mrb[0].mxu0
      %v514 = vadd.f32 0.0, %v513
      %515 = vdwg.mxu0
      %v516 = vpack.c.bf16 %v426, %v422
      %v517 = vpack.c.bf16 %v428, %v424
      %v520 = vunpack.c.l.b16 %v516
      %v521 = vunpack.c.l.b16 %v517
      %v522 = vunpack.c.h.b16 %v516
      %v523 = vunpack.c.h.b16 %v517
      %v524 = vpack.c.b16 %v521, %v520
      %v525 = vpack.c.b16 %v523, %v522
      %528 = vst [vmem:[%s181] sm:$0xff] %v524
      %529 = vst [vmem:[%s181 + $0x8] sm:$0xff] %v525
      %v530 = vpack.c.bf16 %v469, %v465
      %v531 = vpack.c.bf16 %v471, %v467
      %v534 = vunpack.c.l.b16 %v530
      %v535 = vunpack.c.l.b16 %v531
      %v536 = vunpack.c.h.b16 %v530
      %v537 = vunpack.c.h.b16 %v531
      %v538 = vpack.c.b16 %v535, %v534
      %v539 = vpack.c.b16 %v537, %v536
      %s542 = scalar_lea.vmem %s181, 16
      %543 = vst [vmem:[%s542] sm:$0xff] %v538
      %544 = vst [vmem:[%s542 + $0x8] sm:$0xff] %v539
      %v545 = vpack.c.bf16 %v512, %v508
      %v546 = vpack.c.bf16 %v514, %v510
      %v549 = vunpack.c.l.b16 %v545
      %v550 = vunpack.c.l.b16 %v546
      %v551 = vunpack.c.h.b16 %v545
      %v552 = vunpack.c.h.b16 %v546
      %v553 = vpack.c.b16 %v550, %v549
      %v554 = vpack.c.b16 %v552, %v551
      %s557 = scalar_lea.vmem %s181, 32
      %558 = vst [vmem:[%s557] sm:$0xff] %v553
      %559 = vst [vmem:[%s557 + $0x8] sm:$0xff] %v554
      %s560 = smul.u32 2, %s18
      %p561 = scmp.lt.s32.totalorder %s17, 1
      %s562 = scalar_select %p561, %s17, 1
      %p563 = scmp.lt.s32.totalorder %s560, 1
      %s564 = scalar_select %p563, %s560, 1
      %s565 = smul.addr %s562, 12
      %s566 = sadd.s32 %s564, %s565
      %s567 = smul.addr %s566, 4
      %s568 = scalar_lea.vmem %s2, %s567
      // Predicated region
      $region29: #{vn_linear.1} parent=27 // pred_check
        %p569 = pneg %p94
      $region30: #{vn_linear.1} parent=27 // pred_check_branch
        %571 = sbr.rel (%p569) target = $region32
      $region31: #{vn_linear.1} parent=27 // pred_region
        %s572 = smul.u32 2, %s18
      $region32: #{vn_linear.1} parent=27 // pred_fallthru
        _
    $region28: #{vn_linear.1} parent=5 // pred_fallthru
      _
    %p573 = scmp.le.s32.totalorder 2, %s8
    // Predicated region
    $region33: #{vn_linear.1} parent=5 // pred_check
      %p574 = pneg %p573
    $region34: #{vn_linear.1} parent=5 // pred_check_branch
      %576 = sbr.rel (%p574) target = $region36
    $region35: #{vn_linear.1} parent=5 // pred_region
      %s577 = ssub.s32 %s8, 2
      // Predicated region
      $region37: #{vn_linear.1} parent=35 // pred_check
        %p578 = pneg %p100
      $region38: #{vn_linear.1} parent=35 // pred_check_branch
        %580 = sbr.rel (%p578) target = $region40
      $region39: #{vn_linear.1} parent=35 // pred_region
        %s581 = smul.u32 2, %s20
        %p582 = scmp.lt.s32.totalorder %s19, 1
        %s583 = scalar_select %p582, %s19, 1
        %p584 = scmp.lt.s32.totalorder %s581, 1
        %s585 = scalar_select %p584, %s581, 1
        %s586 = smul.addr %s583, 12
        %s587 = sadd.s32 %s585, %s586
        %s588 = smul.addr %s587, 4
        %s589 = scalar_lea.vmem %s2, %s588
      $region40: #{vn_linear.1} parent=35 // pred_fallthru
        _
    $region36: #{vn_linear.1} parent=5 // pred_fallthru
      _
  $region6: #{vn_linear.1} parent=0 // loop_footer
    %s12 = sadd.s32 1, %s8
  $region7: #{vn_linear.1} parent=0 // loop_footer_branch
    %7 = sbr.rel target = $region3
  $region8: #{vn_linear.1} parent=0 // loop_exit
    _

</llo_original>
